<compile_context>
chip_gen: v5e
topology: v5e:2x2
jax: 0.10.0
libtpu: 0.0.40
codegen_flags: <defaults>
</compile_context>

<pallas_src>
import jax
import jax.numpy as jnp
from jax.experimental import pallas as pl
from jax.experimental.pallas import tpu as pltpu


def _round_up(x, m):
    return ((x + m - 1) // m) * m


def gin_conv_kernel(eps_ref, adj_ref, feat_src_ref, feat_dst_ref, wt_ref, b_ref,
                    out_ref, acc_ref):
    """One (row-tile, source-tile) grid step.

    adj_ref      : (TM, TK)        int8   adjacency tile (0/1)
    feat_src_ref : (TK, d_in_p)    bf16   source-node feature tile
    feat_dst_ref : (TM, d_in_p)    bf16   destination-node feature tile
    wt_ref       : (d_in_p, d_out_p) bf16 Linear weight, pre-transposed
    b_ref        : (1, d_out_p)    f32    Linear bias
    out_ref      : (TM, d_out_p)   f32
    acc_ref      : (TM, d_in_p)    f32    neighbour-sum accumulator (scratch)
    """
    k = pl.program_id(1)

    @pl.when(k == 0)
    def _init():
        acc_ref[...] = jnp.zeros_like(acc_ref)

    # sum aggregation over this source tile: int8 0/1 -> bf16 (exact), bf16 x
    # bf16 on the MXU with f32 accumulation.  Upcast is cheap VPU work hidden
    # under the adjacency DMA (and required on v7x, which has no int MXU).
    adj_bf16 = adj_ref[...].astype(jnp.bfloat16)
    acc_ref[...] += jnp.dot(adj_bf16, feat_src_ref[...],
                            preferred_element_type=jnp.float32)

    @pl.when(k == pl.num_programs(1) - 1)
    def _finalize():
        scale = 1.0 + eps_ref[0]                              # (1 + eps), f32
        h = scale * feat_dst_ref[...].astype(jnp.float32) + acc_ref[...]
        # apply_func: Linear(in_dim, out_dim)  ->  y = h @ W^T + b (bf16 MXU,
        # f32 accumulate, bias added in f32).
        y = jnp.dot(h.astype(jnp.bfloat16), wt_ref[...],
                    preferred_element_type=jnp.float32) + b_ref[...]
        out_ref[...] = y.astype(out_ref.dtype)
    # TODO(synk): residual=True branch (res_fc) and 'max'/'mean' aggregators not
    # implemented; module defaults are aggregator='sum', residual=False.


def gin_conv(adj, feat, weight, bias, eps, *, tm=1024, tk=512):
    """GINConv forward (sum aggregation, apply_func=Linear, residual=False).

    adj: [N, N] dense adjacency (0/1), feat: [N, d_in], weight: [d_out, d_in],
    bias: [d_out], eps: python/scalar float.  Returns [N, d_out] float32.
    """
    N, d_in = feat.shape
    d_out = weight.shape[0]

    # --- lane-dense feature dims; decoupled row / contraction padding ---------
    d_in_p = _round_up(d_in, 128)
    d_out_p = _round_up(d_out, 128)
    n_dst_32 = _round_up(N, 32)      # int8 tiles need sublane multiples of 32
    n_src_128 = _round_up(N, 128)    # contraction/lane axis of the adj tile

    # --- generation-aware VMEM budget (v7x: 64 MiB/TC, v5e/v6e: 128 MiB) ------
    try:
        vmem_cap = int(getattr(pltpu.get_tpu_info(), "vmem_capacity_bytes",
                               64 << 20))
    except Exception:  # pragma: no cover - conservative fallback
        vmem_cap = 64 << 20
    vmem_cap = max(vmem_cap, 32 << 20)
    budget_cap = max(16 << 20, min(vmem_cap - (20 << 20), int(vmem_cap * 0.75)))

    def _budget(tm_, tk_):
        # Every pipelined input/output is double-buffered by default.
        return (2 * tm_ * tk_ * 1              # adj tile (int8)
                + 2 * tk_ * d_in_p * 2         # feat source tile (bf16)
                + 2 * tm_ * d_in_p * 2         # feat destination tile (bf16)
                + 2 * d_in_p * d_out_p * 2     # W^T (bf16)
                + 2 * d_out_p * 4              # bias
                + 2 * tm_ * d_out_p * 4        # output tile (f32)
                + tm_ * d_in_p * 4)            # f32 accumulator scratch

    # v7x megacore: keep at least 2 row tiles so the "parallel" axis splits
    # across both TensorCores.
    tm = min(tm, _round_up(pl.cdiv(n_dst_32, 2), 32))
    tm = max(32, _round_up(tm, 32))
    tk = max(128, _round_up(min(tk, n_src_128), 128))

    while _budget(tm, tk) > budget_cap and (tm > 32 or tk > 128):
        if tk >= tm and tk > 128:
            tk = max(128, _round_up(tk // 2, 128))
        elif tm > 32:
            tm = max(32, _round_up(tm // 2, 32))
        else:
            tk = max(128, _round_up(tk // 2, 128))

    # Even tiling: shrink tiles to the minimum that still covers N in the same
    # number of blocks (avoids round_up(N, tile) over-padding on the big axes).
    nm = pl.cdiv(n_dst_32, tm)
    tm = _round_up(pl.cdiv(n_dst_32, nm), 32)
    n_dst_p = nm * tm
    nk = pl.cdiv(n_src_128, tk)
    tk = _round_up(pl.cdiv(n_src_128, nk), 128)
    n_src_p = nk * tk

    # --- padded / dtype-cast operands -----------------------------------------
    n_feat_p = max(n_dst_p, n_src_p)   # feat is viewed both as src and dst tiles
    adj_p = jnp.zeros((n_dst_p, n_src_p), jnp.int8).at[:N, :N].set(
        adj.astype(jnp.int8))                               # 0/1 -> exact in int8
    feat_p = jnp.zeros((n_feat_p, d_in_p), jnp.bfloat16).at[:N, :d_in].set(
        feat.astype(jnp.bfloat16))
    wt_p = jnp.zeros((d_in_p, d_out_p), jnp.bfloat16).at[:d_in, :d_out].set(
        weight.T.astype(jnp.bfloat16))
    b_p = jnp.zeros((1, d_out_p), jnp.float32).at[0, :d_out].set(
        bias.astype(jnp.float32))
    eps_arr = jnp.asarray([eps], dtype=jnp.float32)

    grid = (nm, nk)
    vmem_limit = int(max(32 << 20,
                         min(_budget(tm, tk) + (8 << 20), vmem_cap - (8 << 20))))

    out_p = pl.pallas_call(
        gin_conv_kernel,
        out_shape=jax.ShapeDtypeStruct((n_dst_p, d_out_p), jnp.float32),
        grid=grid,
        in_specs=[
            pl.BlockSpec(memory_space=pltpu.MemorySpace.SMEM),      # eps scalar
            pl.BlockSpec((tm, tk), lambda i, k: (i, k)),            # adj tile
            pl.BlockSpec((tk, d_in_p), lambda i, k: (k, 0)),        # feat (src)
            pl.BlockSpec((tm, d_in_p), lambda i, k: (i, 0)),        # feat (dst)
            pl.BlockSpec((d_in_p, d_out_p), lambda i, k: (0, 0)),   # W^T
            pl.BlockSpec((1, d_out_p), lambda i, k: (0, 0)),        # bias
        ],
        out_specs=pl.BlockSpec((tm, d_out_p), lambda i, k: (i, 0)),
        scratch_shapes=[pltpu.VMEM((tm, d_in_p), jnp.float32)],     # neigh acc
        compiler_params=pltpu.CompilerParams(
            dimension_semantics=("parallel", "arbitrary"),
            vmem_limit_bytes=vmem_limit),
    )(eps_arr, adj_p, feat_p, feat_p, wt_p, b_p)

    # Padded destination rows carry `bias`; this slice removes them — keep it.
    return out_p[:N, :d_out]


if __name__ == "__main__":
    key = jax.random.PRNGKey(0)
    k1, k2, k3, k4 = jax.random.split(key, 4)

    N, d_in, d_out = 256, 32, 32         # small graph: 256 nodes, hidden 32
    init_eps = 0.1                       # non-zero so the eps term is exercised

    feat = jax.random.normal(k1, (N, d_in), dtype=jnp.float32)
    adj = (jax.random.uniform(k2, (N, N)) < 0.2).astype(jnp.float32)

    # apply_func = nn.Linear(in_dim, out_dim), PyTorch-style uniform init
    bound = 1.0 / (d_in ** 0.5)
    weight = jax.random.uniform(k3, (d_out, d_in), minval=-bound, maxval=bound,
                                dtype=jnp.float32)
    bias = jax.random.uniform(k4, (d_out,), minval=-bound, maxval=bound,
                              dtype=jnp.float32)

    out = gin_conv(adj, feat, weight, bias, init_eps)
    out = jax.block_until_ready(out)
    assert out.shape == (N, d_out)

    hp = jax.lax.Precision.HIGHEST

    # (a) structural check: emulate the kernel's intentional bf16 quantisation
    #     (feat, h, W^T) with f32 accumulation -> tight tolerance.
    feat_q = feat.astype(jnp.bfloat16).astype(jnp.float32)
    wt_q = weight.T.astype(jnp.bfloat16).astype(jnp.float32)
    neigh_q = jnp.dot(adj, feat_q, precision=hp)
    h_q = ((1.0 + init_eps) * feat_q + neigh_q).astype(jnp.bfloat16).astype(jnp.float32)
    ref_q = jnp.dot(h_q, wt_q, precision=hp) + bias
    assert jnp.allclose(out, ref_q, atol=1e-2, rtol=1e-2), \
        float(jnp.max(jnp.abs(out - ref_q)))

    # (b) end-to-end check against the full-f32 PyTorch forward (tolerance
    #     reflects the intentional bf16 casts of features, h and W^T).
    neigh = jnp.dot(adj, feat, precision=hp)
    ref = jnp.dot((1.0 + init_eps) * feat + neigh, weight.T, precision=hp) + bias
    assert jnp.allclose(out, ref, atol=1.5e-1, rtol=5e-2), \
        float(jnp.max(jnp.abs(out - ref)))

    print("KERNEL_OK")
</pallas_src>

<mosaic_0001>
module attributes {stable_mosaic.version = 11 : i64} {
  func.func @gin_conv_kernel(%arg0: i32, %arg1: i32, %arg2: memref<1xf32, #tpu.memory_space<smem>>, %arg3: memref<128x256xi8, #tpu.memory_space<vmem>>, %arg4: memref<256x128xbf16, #tpu.memory_space<vmem>>, %arg5: memref<128x128xbf16, #tpu.memory_space<vmem>>, %arg6: memref<128x128xbf16, #tpu.memory_space<vmem>>, %arg7: memref<1x128xf32, #tpu.memory_space<vmem>>, %arg8: memref<128x128xf32, #tpu.memory_space<vmem>>, %arg9: memref<128x128xf32, #tpu.memory_space<vmem>>) attributes {dimension_semantics = [#tpu.dimension_semantics<parallel>, #tpu.dimension_semantics<arbitrary>], iteration_bounds = array<i64: 2, 1>, scalar_prefetch = 0 : i64, scratch_operands = 1 : i64, tpu.core_type = #tpu.core_type<tc>, window_params = [{transform_indices = @transform_0, window_bounds = array<i64: 1>}, {transform_indices = @transform_1, window_bounds = array<i64: 128, 256>}, {transform_indices = @transform_2, window_bounds = array<i64: 256, 128>}, {transform_indices = @transform_3, window_bounds = array<i64: 128, 128>}, {pipeline_mode = #tpu.pipeline_mode<synchronous>, transform_indices = @transform_4, window_bounds = array<i64: 128, 128>}, {pipeline_mode = #tpu.pipeline_mode<synchronous>, transform_indices = @transform_5, window_bounds = array<i64: 1, 128>}, {transform_indices = @transform_6, window_bounds = array<i64: 128, 128>}]} {
    %c0_i32 = arith.constant 0 : i32
    %0 = arith.cmpi eq, %arg1, %c0_i32 : i32
    %1 = arith.extui %0 : i1 to i32
    %c0_i32_0 = arith.constant 0 : i32
    %2 = arith.cmpi ne, %1, %c0_i32_0 : i32
    scf.if %2 {
      %cst_10 = arith.constant 0.000000e+00 : f32
      %13 = vector.broadcast %cst_10 : f32 to vector<128x128xf32>
      %c0_11 = arith.constant 0 : index
      %c0_12 = arith.constant 0 : index
      %14 = vector.load %arg9[%c0_11, %c0_12] : memref<128x128xf32, #tpu.memory_space<vmem>>, vector<128x128xf32>
      tpu.vector_store %arg9[%c0_11, %c0_12], %13 {strides = array<i32>} : memref<128x128xf32, #tpu.memory_space<vmem>>, vector<128x128xf32>,
    } else {
    }
    %c0 = arith.constant 0 : index
    %c0_1 = arith.constant 0 : index
    %3 = vector.load %arg3[%c0, %c0_1] : memref<128x256xi8, #tpu.memory_space<vmem>>, vector<128x256xi8>
    %4 = arith.sitofp %3 : vector<128x256xi8> to vector<128x256xbf16>
    %c0_2 = arith.constant 0 : index
    %c0_3 = arith.constant 0 : index
    %5 = vector.load %arg9[%c0_2, %c0_3] : memref<128x128xf32, #tpu.memory_space<vmem>>, vector<128x128xf32>
    %c0_4 = arith.constant 0 : index
    %c0_5 = arith.constant 0 : index
    %6 = vector.load %arg4[%c0_4, %c0_5] : memref<256x128xbf16, #tpu.memory_space<vmem>>, vector<256x128xbf16>
    %cst = arith.constant dense<0.000000e+00> : vector<128x128xf32>
    %7 = tpu.matmul %4, %6, %cst {dimension_numbers = #tpu.dot_dimension_numbers<[1], [0], [0], [1], [0, 0, 1, 1], [], []>} : vector<128x256xbf16>, vector<256x128xbf16>, vector<128x128xf32> -> vector<128x128xf32>
    %8 = arith.addf %5, %7 : vector<128x128xf32>
    %c0_6 = arith.constant 0 : index
    %c0_7 = arith.constant 0 : index
    %9 = vector.load %arg9[%c0_6, %c0_7] : memref<128x128xf32, #tpu.memory_space<vmem>>, vector<128x128xf32>
    tpu.vector_store %arg9[%c0_6, %c0_7], %8 {strides = array<i32>} : memref<128x128xf32, #tpu.memory_space<vmem>>, vector<128x128xf32>,
    %c0_i32_8 = arith.constant 0 : i32
    %10 = arith.cmpi eq, %arg1, %c0_i32_8 : i32
    %11 = arith.extui %10 : i1 to i32
    %c0_i32_9 = arith.constant 0 : i32
    %12 = arith.cmpi ne, %11, %c0_i32_9 : i32
    scf.if %12 {
      %c0_10 = arith.constant 0 : index
      %13 = memref.load %arg2[%c0_10] : memref<1xf32, #tpu.memory_space<smem>>
      %cst_11 = arith.constant 1.000000e+00 : f32
      %14 = arith.addf %cst_11, %13 : f32
      %c0_12 = arith.constant 0 : index
      %c0_13 = arith.constant 0 : index
      %15 = vector.load %arg5[%c0_12, %c0_13] : memref<128x128xbf16, #tpu.memory_space<vmem>>, vector<128x128xbf16>
      %16 = arith.extf %15 : vector<128x128xbf16> to vector<128x128xf32>
      %17 = vector.broadcast %14 : f32 to vector<128x128xf32>
      %18 = arith.mulf %17, %16 : vector<128x128xf32>
      %c0_14 = arith.constant 0 : index
      %c0_15 = arith.constant 0 : index
      %19 = vector.load %arg9[%c0_14, %c0_15] : memref<128x128xf32, #tpu.memory_space<vmem>>, vector<128x128xf32>
      %20 = arith.addf %18, %19 : vector<128x128xf32>
      %21 = arith.truncf %20 : vector<128x128xf32> to vector<128x128xbf16>
      %c0_16 = arith.constant 0 : index
      %c0_17 = arith.constant 0 : index
      %22 = vector.load %arg6[%c0_16, %c0_17] : memref<128x128xbf16, #tpu.memory_space<vmem>>, vector<128x128xbf16>
      %cst_18 = arith.constant dense<0.000000e+00> : vector<128x128xf32>
      %23 = tpu.matmul %21, %22, %cst_18 {dimension_numbers = #tpu.dot_dimension_numbers<[1], [0], [0], [1], [0, 0, 1, 1], [], []>} : vector<128x128xbf16>, vector<128x128xbf16>, vector<128x128xf32> -> vector<128x128xf32>
      %c0_19 = arith.constant 0 : index
      %c0_20 = arith.constant 0 : index
      %24 = vector.load %arg7[%c0_19, %c0_20] : memref<1x128xf32, #tpu.memory_space<vmem>>, vector<1x128xf32>
      %25 = vector.broadcast %24 : vector<1x128xf32> to vector<128x128xf32>
      %26 = arith.addf %23, %25 : vector<128x128xf32>
      %c0_21 = arith.constant 0 : index
      %c0_22 = arith.constant 0 : index
      %27 = vector.load %arg8[%c0_21, %c0_22] : memref<128x128xf32, #tpu.memory_space<vmem>>, vector<128x128xf32>
      tpu.vector_store %arg8[%c0_21, %c0_22], %26 {strides = array<i32>} : memref<128x128xf32, #tpu.memory_space<vmem>>, vector<128x128xf32>,
    } else {
    }
    return
  }
  func.func @transform_0(%arg0: i32, %arg1: i32) -> i32 {
    %c0_i32 = arith.constant 0 : i32
    %c0_i32_0 = arith.constant 0 : i32
    return %c0_i32 : i32
  }
  func.func @transform_1(%arg0: i32, %arg1: i32) -> (i32, i32) {
    %c0_i32 = arith.constant 0 : i32
    return %arg0, %arg1 : i32, i32
  }
  func.func @transform_2(%arg0: i32, %arg1: i32) -> (i32, i32) {
    %c0_i32 = arith.constant 0 : i32
    %c0_i32_0 = arith.constant 0 : i32
    return %arg1, %c0_i32 : i32, i32
  }
  func.func @transform_3(%arg0: i32, %arg1: i32) -> (i32, i32) {
    %c0_i32 = arith.constant 0 : i32
    %c0_i32_0 = arith.constant 0 : i32
    return %arg0, %c0_i32 : i32, i32
  }
  func.func @transform_4(%arg0: i32, %arg1: i32) -> (i32, i32) {
    %c0_i32 = arith.constant 0 : i32
    %c0_i32_0 = arith.constant 0 : i32
    %c0_i32_1 = arith.constant 0 : i32
    return %c0_i32, %c0_i32_0 : i32, i32
  }
  func.func @transform_5(%arg0: i32, %arg1: i32) -> (i32, i32) {
    %c0_i32 = arith.constant 0 : i32
    %c0_i32_0 = arith.constant 0 : i32
    %c0_i32_1 = arith.constant 0 : i32
    return %c0_i32, %c0_i32_0 : i32, i32
  }
  func.func @transform_6(%arg0: i32, %arg1: i32) -> (i32, i32) {
    %c0_i32 = arith.constant 0 : i32
    %c0_i32_0 = arith.constant 0 : i32
    return %arg0, %c0_i32 : i32, i32
  }
}

</mosaic_0001>

<llo_original>
// kernel: tpu_custom_call.1
$region0: #{tpu_custom_call.1}
  #allocation0 [shape = 'u32[]', space=smem, size = 0x4, offset = 0x4, fixed_abs, tag = 'smem constant byte address 0x4 - core index']
  #allocation1 [shape = 'u32[72,128]{1,0:T(1,128)}', space=vmem, size = 0x9000, scoped, tag = 'internal scratch']
  #allocation2 [shape = 'f32[128,128]{1,0:T(8,128)}', space=vmem, size = 0x10000, scoped, tag = 'scratch operand']
  #allocation3 [shape = 'f32[1]{0:T(128)S(6)}', space=smem, size = 0x200, scoped, tag = 'scoped memory for tpu_custom_call.1']
  %s0 = inlined_call_operand.<no memory space> [shape: f32[1], index: 0, kind: input, shape index: {}]
  %s1 = inlined_call_operand.hbm [shape: s8[256,256], index: 1, kind: input, shape index: {}]
  %s2 = inlined_call_operand.hbm [shape: bf16[256,128], index: 2, kind: input, shape index: {}]
  %s3 = inlined_call_operand.hbm [shape: bf16[256,128], index: 3, kind: input, shape index: {}]
  %s4 = inlined_call_operand.hbm [shape: bf16[128,128], index: 4, kind: input, shape index: {}]
  %s5 = inlined_call_operand.vmem [shape: f32[1,128], index: 5, kind: input, shape index: {}]
  %s6 = inlined_call_operand.hbm [shape: f32[256,128], index: 6, kind: output, shape index: {}]
  %s7 = sld [smem:[#allocation0]]
  $region81: #{tpu_custom_call.1} parent=0
    _
  %s9 = ssub.s32 1, %s7
  %s10 = scalar_select 0, %s9, %s7
  %11 = sst [smem:[#allocation3]] %s0
  $region1: #{tpu_custom_call.1} parent=0
    #allocation4 [shape = 'u8[65536]{0}', space=vmem, size = 0x10000, scoped, tag = 'input window, operand 1']
    #allocation5 [shape = 's32[2]{0}', space=sflag, size = 0x8, scoped, tag = 'scoped memory for tpu_custom_call.1']
    #allocation6 [shape = 's32[2]{0}', space=sflag, size = 0x8, scoped, tag = 'scoped memory for tpu_custom_call.1']
    #allocation7 [shape = 'u8[65536]{0}', space=vmem, size = 0x10000, scoped, tag = 'input window, operand 2, single buffered']
    #allocation8 [shape = 's32[1]{0}', space=sflag, size = 0x4, scoped, tag = 'scoped memory for tpu_custom_call.1']
    #allocation9 [shape = 'u8[65536]{0}', space=vmem, size = 0x10000, scoped, tag = 'input window, operand 3']
    #allocation10 [shape = 'u8[32768]{0}', space=vmem, size = 0x8000, scoped, tag = 'input window, operand 4, single buffered']
    #allocation11 [shape = 'u8[131072]{0}', space=vmem, size = 0x20000, scoped, tag = 'output window, operand 0']
    %12 = vsyncpa [#allocation5], 0
    %s13 = scalar_lea.sflag [#allocation5], 1
    %14 = vsyncpa %s13, 0
    %15 = vsyncpa [#allocation8], 0
    %16 = vsyncpa [#allocation6], 0
    %s17 = scalar_lea.sflag [#allocation6], 1
    %18 = vsyncpa %s17, 0
    loop: start=0, step=1, limit=4
    $region2: #{tpu_custom_call.1} parent=1 // loop_pre_header
      _
    $region3: #{tpu_custom_call.1} parent=1 // loop_header
      %s20 = sphi 0, %s24
      %p21 = scmp.ge.s32.totalorder %s20, 4
      %s27 = sphi 0, %s39
      %s28 = sphi 0, %s35
      %s29 = sphi 0, %s27
      %s30 = sphi 0, %s28
      %s31 = sphi 0, %s29
      %s32 = sphi 0, %s30
      %s40 = sphi 0, %s40
      %s42 = sphi 0, %s40
      %s43 = sphi 0, %s42
      %s57 = sphi 0, %s43
      %s65 = sphi 0, %s67
      %s68 = sphi 0, %s65
      %s69 = sphi 0, %s68
      %s85 = sphi 0, %s69
      %s91 = sphi 0, %s93
      %s94 = sphi 0, %s91
      %s95 = sphi 0, %s94
      %s111 = sphi 0, %s95
      %s117 = sphi 0, %s119
      %s120 = sphi 0, %s117
      %s121 = sphi 0, %s120
      %s137 = sphi 0, %s121
      %s141 = sphi 0, %s141
      %s143 = sphi 0, %s141
      %s144 = sphi 0, %s143
      %s158 = sphi 0, %s144
      %s162 = sphi 0, %s162
      %s164 = sphi 0, %s162
      %s165 = sphi 0, %s164
      %s179 = sphi 0, %s165
      %s185 = sphi 0, %s187
      %s188 = sphi 0, %s185
      %s189 = sphi 0, %s188
      %s205 = sphi 0, %s189
    $region4: #{tpu_custom_call.1} parent=1 // loop_header_branch
      %23 = sbr.rel (%p21) target = $region8
    $region5: #{tpu_custom_call.1} parent=1 // loop_body
      %s25 = ssub.s32 %s20, 1
      %s26 = ssub.s32 %s20, 2
      %s33 = sadd.s32 1, %s28
      %p34 = scmp.ge.s32.totalorder %s33, 1
      %s35 = scalar_select %p34, 0, %s33
      %s36 = sadd.s32 1, %s27
      %s37 = scalar_select %p34, %s36, %s27
      %p38 = scmp.ge.s32.totalorder %s37, 2
      %s39 = scalar_select %p38, 0, %s37
      %s41 = sadd.s32 %s40, 1
      %p44 = scmp.eq.s32.totalorder %s20, 1
      %p45 = scmp.ne.s32.totalorder %s40, %s42
      %p46 = scmp.eq.s32.totalorder %s20, 0
      %p47 = por %p45, %p46
      %p48 = scmp.ne.s32.totalorder %s40, %s42
      %p49 = scmp.eq.s32.totalorder %s25, 1
      %p50 = por %p48, %p49
      %p51 = scmp.ne.s32.totalorder %s42, %s43
      %p52 = scmp.eq.s32.totalorder %s25, 0
      %p53 = por %p51, %p52
      %p54 = scmp.ne.s32.totalorder %s42, %s43
      %p55 = scmp.eq.s32.totalorder %s26, 1
      %p56 = por %p54, %p55
      %p58 = scmp.ne.s32.totalorder %s43, %s57
      %p59 = scmp.eq.s32.totalorder %s26, 0
      %p60 = por %p58, %p59
      %s61 = ssub.s32 %s27, %s39
      %s62 = ssub.s32 %s28, %s35
      %s63 = sor.u32 %s61, %s62
      %p64 = scmp.eq.s32.totalorder %s63, 0
      %s66 = sadd.s32 %s65, 1
      %s67 = scalar_select %p64, %s65, %s66
      %p70 = pneg %p64
      %p71 = scmp.eq.s32.totalorder %s20, 1
      %p72 = por %p70, %p71
      %p73 = scmp.ne.s32.totalorder %s65, %s68
      %p74 = scmp.eq.s32.totalorder %s20, 0
      %p75 = por %p73, %p74
      %p76 = scmp.ne.s32.totalorder %s65, %s68
      %p77 = scmp.eq.s32.totalorder %s25, 1
      %p78 = por %p76, %p77
      %p79 = scmp.ne.s32.totalorder %s68, %s69
      %p80 = scmp.eq.s32.totalorder %s25, 0
      %p81 = por %p79, %p80
      %p82 = scmp.ne.s32.totalorder %s68, %s69
      %p83 = scmp.eq.s32.totalorder %s26, 1
      %p84 = por %p82, %p83
      %p86 = scmp.ne.s32.totalorder %s69, %s85
      %p87 = scmp.eq.s32.totalorder %s26, 0
      %p88 = por %p86, %p87
      %s89 = ssub.s32 %s28, %s35
      %p90 = scmp.eq.s32.totalorder %s89, 0
      %s92 = sadd.s32 %s91, 1
      %s93 = scalar_select %p90, %s91, %s92
      %p96 = pneg %p90
      %p97 = scmp.eq.s32.totalorder %s20, 1
      %p98 = por %p96, %p97
      %p99 = scmp.ne.s32.totalorder %s91, %s94
      %p100 = scmp.eq.s32.totalorder %s20, 0
      %p101 = por %p99, %p100
      %p102 = scmp.ne.s32.totalorder %s91, %s94
      %p103 = scmp.eq.s32.totalorder %s25, 1
      %p104 = por %p102, %p103
      %p105 = scmp.ne.s32.totalorder %s94, %s95
      %p106 = scmp.eq.s32.totalorder %s25, 0
      %p107 = por %p105, %p106
      %p108 = scmp.ne.s32.totalorder %s94, %s95
      %p109 = scmp.eq.s32.totalorder %s26, 1
      %p110 = por %p108, %p109
      %p112 = scmp.ne.s32.totalorder %s95, %s111
      %p113 = scmp.eq.s32.totalorder %s26, 0
      %p114 = por %p112, %p113
      %s115 = ssub.s32 %s27, %s39
      %p116 = scmp.eq.s32.totalorder %s115, 0
      %s118 = sadd.s32 %s117, 1
      %s119 = scalar_select %p116, %s117, %s118
      %p122 = pneg %p116
      %p123 = scmp.eq.s32.totalorder %s20, 1
      %p124 = por %p122, %p123
      %p125 = scmp.ne.s32.totalorder %s117, %s120
      %p126 = scmp.eq.s32.totalorder %s20, 0
      %p127 = por %p125, %p126
      %p128 = scmp.ne.s32.totalorder %s117, %s120
      %p129 = scmp.eq.s32.totalorder %s25, 1
      %p130 = por %p128, %p129
      %p131 = scmp.ne.s32.totalorder %s120, %s121
      %p132 = scmp.eq.s32.totalorder %s25, 0
      %p133 = por %p131, %p132
      %p134 = scmp.ne.s32.totalorder %s120, %s121
      %p135 = scmp.eq.s32.totalorder %s26, 1
      %p136 = por %p134, %p135
      %p138 = scmp.ne.s32.totalorder %s121, %s137
      %p139 = scmp.eq.s32.totalorder %s26, 0
      %p140 = por %p138, %p139
      %s142 = sadd.s32 %s141, 1
      %p145 = scmp.eq.s32.totalorder %s20, 1
      %p146 = scmp.ne.s32.totalorder %s141, %s143
      %p147 = scmp.eq.s32.totalorder %s20, 0
      %p148 = por %p146, %p147
      %p149 = scmp.ne.s32.totalorder %s141, %s143
      %p150 = scmp.eq.s32.totalorder %s25, 1
      %p151 = por %p149, %p150
      %p152 = scmp.ne.s32.totalorder %s143, %s144
      %p153 = scmp.eq.s32.totalorder %s25, 0
      %p154 = por %p152, %p153
      %p155 = scmp.ne.s32.totalorder %s143, %s144
      %p156 = scmp.eq.s32.totalorder %s26, 1
      %p157 = por %p155, %p156
      %p159 = scmp.ne.s32.totalorder %s144, %s158
      %p160 = scmp.eq.s32.totalorder %s26, 0
      %p161 = por %p159, %p160
      %s163 = sadd.s32 %s162, 1
      %p166 = scmp.eq.s32.totalorder %s20, 1
      %p167 = scmp.ne.s32.totalorder %s162, %s164
      %p168 = scmp.eq.s32.totalorder %s20, 0
      %p169 = por %p167, %p168
      %p170 = scmp.ne.s32.totalorder %s162, %s164
      %p171 = scmp.eq.s32.totalorder %s25, 1
      %p172 = por %p170, %p171
      %p173 = scmp.ne.s32.totalorder %s164, %s165
      %p174 = scmp.eq.s32.totalorder %s25, 0
      %p175 = por %p173, %p174
      %p176 = scmp.ne.s32.totalorder %s164, %s165
      %p177 = scmp.eq.s32.totalorder %s26, 1
      %p178 = por %p176, %p177
      %p180 = scmp.ne.s32.totalorder %s165, %s179
      %p181 = scmp.eq.s32.totalorder %s26, 0
      %p182 = por %p180, %p181
      %s183 = ssub.s32 %s27, %s39
      %p184 = scmp.eq.s32.totalorder %s183, 0
      %s186 = sadd.s32 %s185, 1
      %s187 = scalar_select %p184, %s185, %s186
      %p190 = pneg %p184
      %p191 = scmp.eq.s32.totalorder %s20, 1
      %p192 = por %p190, %p191
      %p193 = scmp.ne.s32.totalorder %s185, %s188
      %p194 = scmp.eq.s32.totalorder %s20, 0
      %p195 = por %p193, %p194
      %p196 = scmp.ne.s32.totalorder %s185, %s188
      %p197 = scmp.eq.s32.totalorder %s25, 1
      %p198 = por %p196, %p197
      %p199 = scmp.ne.s32.totalorder %s188, %s189
      %p200 = scmp.eq.s32.totalorder %s25, 0
      %p201 = por %p199, %p200
      %p202 = scmp.ne.s32.totalorder %s188, %s189
      %p203 = scmp.eq.s32.totalorder %s26, 1
      %p204 = por %p202, %p203
      %p206 = scmp.ne.s32.totalorder %s189, %s205
      %p207 = scmp.eq.s32.totalorder %s26, 0
      %p208 = por %p206, %p207
      %p209 = scmp.le.s32.totalorder 1, %s20
      %p210 = scmp.lt.s32.totalorder %s20, 3
      %p211 = pnand %p209, %p210
      %p212 = pneg %p211
      // Predicated region
      $region9: #{tpu_custom_call.1} parent=5 // pred_check
        _
      $region10: #{tpu_custom_call.1} parent=5 // pred_check_branch
        %214 = sbr.rel (%p211) target = $region12
      $region11: #{tpu_custom_call.1} parent=5 // pred_region
        %s215 = ssub.s32 %s20, 1
        // Predicated region
        $region13: #{tpu_custom_call.1} parent=11 // pred_check
          %p216 = pneg %p53
        $region14: #{tpu_custom_call.1} parent=11 // pred_check_branch
          %218 = sbr.rel (%p216) target = $region16
        $region15: #{tpu_custom_call.1} parent=11 // pred_region
          _
        $region16: #{tpu_custom_call.1} parent=11 // pred_fallthru
          _
        // Predicated region
        $region17: #{tpu_custom_call.1} parent=11 // pred_check
          %p219 = pneg %p107
        $region18: #{tpu_custom_call.1} parent=11 // pred_check_branch
          %221 = sbr.rel (%p219) target = $region20
        $region19: #{tpu_custom_call.1} parent=11 // pred_region
          %s222 = smul.u32 32, %s30
          %224 = vsyncadd [#allocation8], 0
          %s225 = smul.addr %s222, 4
          %s226 = scalar_lea.hbm %s2, %s225
          %s227 = sshll.u32 %s226, 4
          %s228 = int_to_ptr.hbm [resolvable:$true] %s227
          %s229 = sshll.u32 [#allocation7], 4
          %s230 = int_to_ptr.vmem [resolvable:$true] %s229
          %235 = dma.hbm_to_vmem [thread:$0]  %s228, 2048, %s230, [#allocation8], 64, 64, 4
        $region20: #{tpu_custom_call.1} parent=11 // pred_fallthru
          _
        // Predicated region
        $region21: #{tpu_custom_call.1} parent=11 // pred_check
          %p236 = pneg %p154
        $region22: #{tpu_custom_call.1} parent=11 // pred_check_branch
          %238 = sbr.rel (%p236) target = $region24
        $region23: #{tpu_custom_call.1} parent=11 // pred_region
          %240 = vsyncadd [#allocation8], 0
          %s241 = sshll.u32 %s4, 4
          %s242 = int_to_ptr.hbm [resolvable:$true] %s241
          %s243 = sshll.u32 [#allocation10], 4
          %s244 = int_to_ptr.vmem [resolvable:$true] %s243
          %249 = dma.hbm_to_vmem [thread:$0]  %s242, 1024, %s244, [#allocation8], 64, 64, 4
        $region24: #{tpu_custom_call.1} parent=11 // pred_fallthru
          _
        // Predicated region
        $region25: #{tpu_custom_call.1} parent=11 // pred_check
          %p250 = pneg %p175
        $region26: #{tpu_custom_call.1} parent=11 // pred_check_branch
          %252 = sbr.rel (%p250) target = $region28
        $region27: #{tpu_custom_call.1} parent=11 // pred_region
          _
        $region28: #{tpu_custom_call.1} parent=11 // pred_fallthru
          _
      $region12: #{tpu_custom_call.1} parent=5 // pred_fallthru
        _
      %p253 = scmp.lt.s32.totalorder %s20, 2
      // Predicated region
      $region29: #{tpu_custom_call.1} parent=5 // pred_check
        %p254 = pneg %p253
      $region30: #{tpu_custom_call.1} parent=5 // pred_check_branch
        %256 = sbr.rel (%p254) target = $region32
      $region31: #{tpu_custom_call.1} parent=5 // pred_region
        // Predicated region
        $region33: #{tpu_custom_call.1} parent=31 // pred_check
          %p257 = pneg %p75
        $region34: #{tpu_custom_call.1} parent=31 // pred_check_branch
          %259 = sbr.rel (%p257) target = $region36
        $region35: #{tpu_custom_call.1} parent=31 // pred_region
          %s260 = sand.u32 %s20, 1
          %s261 = scalar_lea.sflag [#allocation5], %s260
          %s262 = sand.u32 %s65, 1
          %s263 = smul.addr %s262, 64
          %s264 = scalar_lea.vmem [#allocation4], %s263
          %s265 = smul.u32 4, %s27
          %s266 = smul.u32 2, %s28
          %268 = vsyncadd %s261, 0
          %s269 = smul.addr %s265, 2
          %s270 = sadd.s32 %s266, %s269
          %s271 = smul.addr %s270, 8
          %s272 = scalar_lea.hbm %s1, %s271
          %s273 = sshll.u32 %s272, 4
          %s274 = int_to_ptr.hbm [resolvable:$true] %s273
          %s275 = sshll.u32 %s264, 4
          %s276 = int_to_ptr.vmem [resolvable:$true] %s275
          %281 = dma.hbm_to_vmem [thread:$0]  %s274, 1024, %s276, %s261, 256, 256, 16
        $region36: #{tpu_custom_call.1} parent=31 // pred_fallthru
          _
        // Predicated region
        $region37: #{tpu_custom_call.1} parent=31 // pred_check
          %p282 = pneg %p127
        $region38: #{tpu_custom_call.1} parent=31 // pred_check_branch
          %284 = sbr.rel (%p282) target = $region40
        $region39: #{tpu_custom_call.1} parent=31 // pred_region
          %s285 = sand.u32 %s20, 1
          %s286 = scalar_lea.sflag [#allocation5], %s285
          %s287 = sand.u32 %s117, 1
          %s288 = smul.addr %s287, 64
          %s289 = scalar_lea.vmem [#allocation9], %s288
          %s290 = smul.u32 16, %s27
          %292 = vsyncadd %s286, 0
          %s293 = smul.addr %s290, 4
          %s294 = scalar_lea.hbm %s3, %s293
          %s295 = sshll.u32 %s294, 4
          %s296 = int_to_ptr.hbm [resolvable:$true] %s295
          %s297 = sshll.u32 %s289, 4
          %s298 = int_to_ptr.vmem [resolvable:$true] %s297
          %303 = dma.hbm_to_vmem [thread:$0]  %s296, 1024, %s298, %s286, 64, 64, 4
        $region40: #{tpu_custom_call.1} parent=31 // pred_fallthru
          _
      $region32: #{tpu_custom_call.1} parent=5 // pred_fallthru
        _
      %p304 = scmp.le.s32.totalorder 1, %s20
      %p305 = scmp.lt.s32.totalorder %s20, 3
      %p306 = pnand %p304, %p305
      %p307 = pneg %p306
      // Predicated region
      $region41: #{tpu_custom_call.1} parent=5 // pred_check
        _
      $region42: #{tpu_custom_call.1} parent=5 // pred_check_branch
        %309 = sbr.rel (%p306) target = $region44
      $region43: #{tpu_custom_call.1} parent=5 // pred_region
        %s310 = ssub.s32 %s20, 1
        %s311 = sand.u32 %s25, 1
        %s312 = scalar_lea.sflag [#allocation5], %s311
        %s313 = sand.u32 %s68, 1
        %s314 = smul.addr %s313, 64
        %s315 = scalar_lea.vmem [#allocation4], %s314
        // Predicated region
        $region45: #{tpu_custom_call.1} parent=43 // pred_check
          %p316 = pneg %p81
        $region46: #{tpu_custom_call.1} parent=43 // pred_check_branch
          %318 = sbr.rel (%p316) target = $region48
        $region47: #{tpu_custom_call.1} parent=43 // pred_region
          %320 = dma.done %s312, 1024
        $region48: #{tpu_custom_call.1} parent=43 // pred_fallthru
          _
        // Predicated region
        $region49: #{tpu_custom_call.1} parent=43 // pred_check
          %p321 = pneg %p107
        $region50: #{tpu_custom_call.1} parent=43 // pred_check_branch
          %323 = sbr.rel (%p321) target = $region52
        $region51: #{tpu_custom_call.1} parent=43 // pred_region
          %325 = dma.done [#allocation8], 2048
        $region52: #{tpu_custom_call.1} parent=43 // pred_fallthru
          _
        %s326 = sand.u32 %s25, 1
        %s327 = scalar_lea.sflag [#allocation5], %s326
        %s328 = sand.u32 %s120, 1
        %s329 = smul.addr %s328, 64
        %s330 = scalar_lea.vmem [#allocation9], %s329
        // Predicated region
        $region53: #{tpu_custom_call.1} parent=43 // pred_check
          %p331 = pneg %p133
        $region54: #{tpu_custom_call.1} parent=43 // pred_check_branch
          %333 = sbr.rel (%p331) target = $region56
        $region55: #{tpu_custom_call.1} parent=43 // pred_region
          %335 = dma.done %s327, 1024
        $region56: #{tpu_custom_call.1} parent=43 // pred_fallthru
          _
        // Predicated region
        $region57: #{tpu_custom_call.1} parent=43 // pred_check
          %p336 = pneg %p154
        $region58: #{tpu_custom_call.1} parent=43 // pred_check_branch
          %338 = sbr.rel (%p336) target = $region60
        $region59: #{tpu_custom_call.1} parent=43 // pred_region
          %340 = dma.done [#allocation8], 1024
        $region60: #{tpu_custom_call.1} parent=43 // pred_fallthru
          _
        %p341 = pneg %p53
        %p342 = pneg %p50
        %s343 = sand.u32 %s25, 1
        %s344 = scalar_lea.sflag [#allocation5], %s343
        %s345 = sand.u32 %s68, 1
        %s346 = smul.addr %s345, 64
        %s347 = scalar_lea.vmem [#allocation4], %s346
        %p348 = pneg %p81
        %p349 = pneg %p78
        %p350 = pneg %p107
        %p351 = pneg %p104
        %s352 = sand.u32 %s25, 1
        %s353 = scalar_lea.sflag [#allocation5], %s352
        %s354 = sand.u32 %s120, 1
        %s355 = smul.addr %s354, 64
        %s356 = scalar_lea.vmem [#allocation9], %s355
        %p357 = pneg %p133
        %p358 = pneg %p130
        %p359 = pneg %p154
        %p360 = pneg %p151
        %p361 = pneg %p175
        %p362 = pneg %p172
        %p363 = pneg %p201
        %p364 = pneg %p198
        %s365 = sand.u32 %s188, 1
        %s366 = scalar_lea.sflag [#allocation6], %s365
        %s367 = sand.u32 %s188, 1
        %s368 = smul.addr %s367, 128
        %s369 = scalar_lea.vmem [#allocation11], %s368
        %s370 = smul.u32 4, %s29
        %s371 = smul.u32 2, %s30
        %s372 = smul.u32 32, %s30
        %s373 = smul.u32 16, %s29
        %s374 = smul.u32 16, %s29
        %p375 = scmp.eq.s32.totalorder %s30, 0
        // Predicated region
        $region61: #{tpu_custom_call.1} parent=43 // pred_check
          %p376 = pneg %p375
        $region62: #{tpu_custom_call.1} parent=43 // pred_check_branch
          %378 = sbr.rel (%p376) target = $region64
        $region63: #{tpu_custom_call.1} parent=43 // pred_region
          %379 = vst [vmem:[#allocation2] sm:$0xff] 0.0
          %380 = vst [vmem:[#allocation2 + $0x8] sm:$0xff] 0.0
          %381 = vst [vmem:[#allocation2 + $0x10] sm:$0xff] 0.0
          %382 = vst [vmem:[#allocation2 + $0x18] sm:$0xff] 0.0
          %383 = vst [vmem:[#allocation2 + $0x20] sm:$0xff] 0.0
          %384 = vst [vmem:[#allocation2 + $0x28] sm:$0xff] 0.0
          %385 = vst [vmem:[#allocation2 + $0x30] sm:$0xff] 0.0
          %386 = vst [vmem:[#allocation2 + $0x38] sm:$0xff] 0.0
          %387 = vst [vmem:[#allocation2 + $0x40] sm:$0xff] 0.0
          %388 = vst [vmem:[#allocation2 + $0x48] sm:$0xff] 0.0
          %389 = vst [vmem:[#allocation2 + $0x50] sm:$0xff] 0.0
          %390 = vst [vmem:[#allocation2 + $0x58] sm:$0xff] 0.0
          %391 = vst [vmem:[#allocation2 + $0x60] sm:$0xff] 0.0
          %392 = vst [vmem:[#allocation2 + $0x68] sm:$0xff] 0.0
          %393 = vst [vmem:[#allocation2 + $0x70] sm:$0xff] 0.0
          %394 = vst [vmem:[#allocation2 + $0x78] sm:$0xff] 0.0
        $region64: #{tpu_custom_call.1} parent=43 // pred_fallthru
          _
        %v395 = vld [vmem:[%s315] sm:$0xff]
        %v396 = vld [vmem:[%s315 + $0x8] sm:$0xff]
        %v397 = vld [vmem:[%s315 + $0x10] sm:$0xff]
        %v398 = vld [vmem:[%s315 + $0x18] sm:$0xff]
        %v399 = vld [vmem:[%s315 + $0x20] sm:$0xff]
        %v400 = vld [vmem:[%s315 + $0x28] sm:$0xff]
        %v401 = vld [vmem:[%s315 + $0x30] sm:$0xff]
        %v402 = vld [vmem:[%s315 + $0x38] sm:$0xff]
        %v403 = vunpack.c.0.s8 %v395
        %v404 = vunpack.c.0.s8 %v396
        %v405 = vunpack.c.1.s8 %v395
        %v406 = vunpack.c.1.s8 %v396
        %v407 = vunpack.c.2.s8 %v395
        %v408 = vunpack.c.2.s8 %v396
        %v409 = vunpack.c.3.s8 %v395
        %v410 = vunpack.c.3.s8 %v396
        %v411 = vunpack.c.0.s8 %v397
        %v412 = vunpack.c.0.s8 %v398
        %v413 = vunpack.c.1.s8 %v397
        %v414 = vunpack.c.1.s8 %v398
        %v415 = vunpack.c.2.s8 %v397
        %v416 = vunpack.c.2.s8 %v398
        %v417 = vunpack.c.3.s8 %v397
        %v418 = vunpack.c.3.s8 %v398
        %v419 = vunpack.c.0.s8 %v399
        %v420 = vunpack.c.0.s8 %v400
        %v421 = vunpack.c.1.s8 %v399
        %v422 = vunpack.c.1.s8 %v400
        %v423 = vunpack.c.2.s8 %v399
        %v424 = vunpack.c.2.s8 %v400
        %v425 = vunpack.c.3.s8 %v399
        %v426 = vunpack.c.3.s8 %v400
        %v427 = vunpack.c.0.s8 %v401
        %v428 = vunpack.c.0.s8 %v402
        %v429 = vunpack.c.1.s8 %v401
        %v430 = vunpack.c.1.s8 %v402
        %v431 = vunpack.c.2.s8 %v401
        %v432 = vunpack.c.2.s8 %v402
        %v433 = vunpack.c.3.s8 %v401
        %v434 = vunpack.c.3.s8 %v402
        %v435 = vcvt.s32.f32 %v403
        %v436 = vcvt.s32.f32 %v404
        %v437 = vcvt.s32.f32 %v405
        %v438 = vcvt.s32.f32 %v406
        %v439 = vcvt.s32.f32 %v407
        %v440 = vcvt.s32.f32 %v408
        %v441 = vcvt.s32.f32 %v409
        %v442 = vcvt.s32.f32 %v410
        %v443 = vcvt.s32.f32 %v411
        %v444 = vcvt.s32.f32 %v412
        %v445 = vcvt.s32.f32 %v413
        %v446 = vcvt.s32.f32 %v414
        %v447 = vcvt.s32.f32 %v415
        %v448 = vcvt.s32.f32 %v416
        %v449 = vcvt.s32.f32 %v417
        %v450 = vcvt.s32.f32 %v418
        %v451 = vcvt.s32.f32 %v419
        %v452 = vcvt.s32.f32 %v420
        %v453 = vcvt.s32.f32 %v421
        %v454 = vcvt.s32.f32 %v422
        %v455 = vcvt.s32.f32 %v423
        %v456 = vcvt.s32.f32 %v424
        %v457 = vcvt.s32.f32 %v425
        %v458 = vcvt.s32.f32 %v426
        %v459 = vcvt.s32.f32 %v427
        %v460 = vcvt.s32.f32 %v428
        %v461 = vcvt.s32.f32 %v429
        %v462 = vcvt.s32.f32 %v430
        %v463 = vcvt.s32.f32 %v431
        %v464 = vcvt.s32.f32 %v432
        %v465 = vcvt.s32.f32 %v433
        %v466 = vcvt.s32.f32 %v434
        %v467 = vpack.c.bf16 %v437, %v435
        %v468 = vpack.c.bf16 %v438, %v436
        %v469 = vpack.c.bf16 %v441, %v439
        %v470 = vpack.c.bf16 %v442, %v440
        %v471 = vpack.c.bf16 %v445, %v443
        %v472 = vpack.c.bf16 %v446, %v444
        %v473 = vpack.c.bf16 %v449, %v447
        %v474 = vpack.c.bf16 %v450, %v448
        %v475 = vpack.c.bf16 %v453, %v451
        %v476 = vpack.c.bf16 %v454, %v452
        %v477 = vpack.c.bf16 %v457, %v455
        %v478 = vpack.c.bf16 %v458, %v456
        %v479 = vpack.c.bf16 %v461, %v459
        %v480 = vpack.c.bf16 %v462, %v460
        %v481 = vpack.c.bf16 %v465, %v463
        %v482 = vpack.c.bf16 %v466, %v464
        %v483 = vld [vmem:[#allocation2] sm:$0xff]
        %v484 = vld [vmem:[#allocation2 + $0x8] sm:$0xff]
        %v485 = vld [vmem:[#allocation2 + $0x10] sm:$0xff]
        %v486 = vld [vmem:[#allocation2 + $0x18] sm:$0xff]
        %v487 = vld [vmem:[#allocation2 + $0x20] sm:$0xff]
        %v488 = vld [vmem:[#allocation2 + $0x28] sm:$0xff]
        %v489 = vld [vmem:[#allocation2 + $0x30] sm:$0xff]
        %v490 = vld [vmem:[#allocation2 + $0x38] sm:$0xff]
        %v491 = vld [vmem:[#allocation2 + $0x40] sm:$0xff]
        %v492 = vld [vmem:[#allocation2 + $0x48] sm:$0xff]
        %v493 = vld [vmem:[#allocation2 + $0x50] sm:$0xff]
        %v494 = vld [vmem:[#allocation2 + $0x58] sm:$0xff]
        %v495 = vld [vmem:[#allocation2 + $0x60] sm:$0xff]
        %v496 = vld [vmem:[#allocation2 + $0x68] sm:$0xff]
        %v497 = vld [vmem:[#allocation2 + $0x70] sm:$0xff]
        %v498 = vld [vmem:[#allocation2 + $0x78] sm:$0xff]
        %v499 = vld [vmem:[#allocation7] sm:$0xf]
        %v500 = vld [vmem:[#allocation7 + $0x4] sm:$0xf]
        %v501 = vld [vmem:[#allocation7 + $0x8] sm:$0xf]
        %v502 = vld [vmem:[#allocation7 + $0xc] sm:$0xf]
        %v503 = vld [vmem:[#allocation7 + $0x10] sm:$0xf]
        %v504 = vld [vmem:[#allocation7 + $0x14] sm:$0xf]
        %v505 = vld [vmem:[#allocation7 + $0x18] sm:$0xf]
        %v506 = vld [vmem:[#allocation7 + $0x1c] sm:$0xf]
        %v507 = vld [vmem:[#allocation7 + $0x20] sm:$0xf]
        %v508 = vld [vmem:[#allocation7 + $0x24] sm:$0xf]
        %v509 = vld [vmem:[#allocation7 + $0x28] sm:$0xf]
        %v510 = vld [vmem:[#allocation7 + $0x2c] sm:$0xf]
        %v511 = vld [vmem:[#allocation7 + $0x30] sm:$0xf]
        %v512 = vld [vmem:[#allocation7 + $0x34] sm:$0xf]
        %v513 = vld [vmem:[#allocation7 + $0x38] sm:$0xf]
        %v514 = vld [vmem:[#allocation7 + $0x3c] sm:$0xf]
        %v515 = vld [vmem:[#allocation7 + $0x40] sm:$0xf]
        %v516 = vld [vmem:[#allocation7 + $0x44] sm:$0xf]
        %v517 = vld [vmem:[#allocation7 + $0x48] sm:$0xf]
        %v518 = vld [vmem:[#allocation7 + $0x4c] sm:$0xf]
        %v519 = vld [vmem:[#allocation7 + $0x50] sm:$0xf]
        %v520 = vld [vmem:[#allocation7 + $0x54] sm:$0xf]
        %v521 = vld [vmem:[#allocation7 + $0x58] sm:$0xf]
        %v522 = vld [vmem:[#allocation7 + $0x5c] sm:$0xf]
        %v523 = vld [vmem:[#allocation7 + $0x60] sm:$0xf]
        %v524 = vld [vmem:[#allocation7 + $0x64] sm:$0xf]
        %v525 = vld [vmem:[#allocation7 + $0x68] sm:$0xf]
        %v526 = vld [vmem:[#allocation7 + $0x6c] sm:$0xf]
        %v527 = vld [vmem:[#allocation7 + $0x70] sm:$0xf]
        %v528 = vld [vmem:[#allocation7 + $0x74] sm:$0xf]
        %v529 = vld [vmem:[#allocation7 + $0x78] sm:$0xf]
        %v530 = vld [vmem:[#allocation7 + $0x7c] sm:$0xf]
        %v563 = vunpack.c.l.b16 %v499
        %v564 = vunpack.c.l.b16 %v500
        %v565 = vunpack.c.l.b16 %v501
        %v566 = vunpack.c.l.b16 %v502
        %v567 = vunpack.c.l.b16 %v503
        %v568 = vunpack.c.l.b16 %v504
        %v569 = vunpack.c.l.b16 %v505
        %v570 = vunpack.c.l.b16 %v506
        %v571 = vunpack.c.l.b16 %v507
        %v572 = vunpack.c.l.b16 %v508
        %v573 = vunpack.c.l.b16 %v509
        %v574 = vunpack.c.l.b16 %v510
        %v575 = vunpack.c.l.b16 %v511
        %v576 = vunpack.c.l.b16 %v512
        %v577 = vunpack.c.l.b16 %v513
        %v578 = vunpack.c.l.b16 %v514
        %v579 = vunpack.c.l.b16 %v515
        %v580 = vunpack.c.l.b16 %v516
        %v581 = vunpack.c.l.b16 %v517
        %v582 = vunpack.c.l.b16 %v518
        %v583 = vunpack.c.l.b16 %v519
        %v584 = vunpack.c.l.b16 %v520
        %v585 = vunpack.c.l.b16 %v521
        %v586 = vunpack.c.l.b16 %v522
        %v587 = vunpack.c.l.b16 %v523
        %v588 = vunpack.c.l.b16 %v524
        %v589 = vunpack.c.l.b16 %v525
        %v590 = vunpack.c.l.b16 %v526
        %v591 = vunpack.c.l.b16 %v527
        %v592 = vunpack.c.l.b16 %v528
        %v593 = vunpack.c.l.b16 %v529
        %v594 = vunpack.c.l.b16 %v530
        %v595 = vpack.c.b16 %v564, %v563
        %v596 = vpack.c.b16 %v566, %v565
        %v597 = vpack.c.b16 %v568, %v567
        %v598 = vpack.c.b16 %v570, %v569
        %v599 = vpack.c.b16 %v572, %v571
        %v600 = vpack.c.b16 %v574, %v573
        %v601 = vpack.c.b16 %v576, %v575
        %v602 = vpack.c.b16 %v578, %v577
        %v603 = vpack.c.b16 %v580, %v579
        %v604 = vpack.c.b16 %v582, %v581
        %v605 = vpack.c.b16 %v584, %v583
        %v606 = vpack.c.b16 %v586, %v585
        %v607 = vpack.c.b16 %v588, %v587
        %v608 = vpack.c.b16 %v590, %v589
        %v609 = vpack.c.b16 %v592, %v591
        %v610 = vpack.c.b16 %v594, %v593
        %627 = vmatpush.bf16.msra.mxu0 %v602
        %628 = vmatpush.bf16.msra.mxu0 %v601
        %629 = vmatpush.bf16.msra.mxu0 %v600
        %630 = vmatpush.bf16.msra.mxu0 %v599
        %631 = vmatpush.bf16.msra.mxu0 %v598
        %632 = vmatpush.bf16.msra.mxu0 %v597
        %633 = vmatpush.bf16.msra.mxu0 %v596
        %634 = vmatpush.bf16.msra.mxu0 %v595
        %635 = vmatmul.bf16.gmra.mxu0 %v467
        %v636 = vpop.f32.mrf.mxu0
        %v637 = vadd.f32 0.0, %v636
        %v638 = vpop.f32.mrf.mxu0
        %v639 = vadd.f32 0.0, %v638
        %640 = vmatmul.bf16.gmra.mxu0 %v469
        %v641 = vpop.f32.mrf.mxu0
        %v642 = vadd.f32 0.0, %v641
        %v643 = vpop.f32.mrf.mxu0
        %v644 = vadd.f32 0.0, %v643
        %645 = vmatmul.bf16.gmra.mxu0 %v471
        %v646 = vpop.f32.mrf.mxu0
        %v647 = vadd.f32 0.0, %v646
        %v648 = vpop.f32.mrf.mxu0
        %v649 = vadd.f32 0.0, %v648
        %650 = vmatmul.bf16.gmra.mxu0 %v473
        %v651 = vpop.f32.mrf.mxu0
        %v652 = vadd.f32 0.0, %v651
        %v653 = vpop.f32.mrf.mxu0
        %v654 = vadd.f32 0.0, %v653
        %655 = vmatmul.bf16.gmra.mxu0 %v475
        %v656 = vpop.f32.mrf.mxu0
        %v657 = vadd.f32 0.0, %v656
        %v658 = vpop.f32.mrf.mxu0
        %v659 = vadd.f32 0.0, %v658
        %660 = vmatmul.bf16.gmra.mxu0 %v477
        %v661 = vpop.f32.mrf.mxu0
        %v662 = vadd.f32 0.0, %v661
        %v663 = vpop.f32.mrf.mxu0
        %v664 = vadd.f32 0.0, %v663
        %665 = vmatmul.bf16.gmra.mxu0 %v479
        %v666 = vpop.f32.mrf.mxu0
        %v667 = vadd.f32 0.0, %v666
        %v668 = vpop.f32.mrf.mxu0
        %v669 = vadd.f32 0.0, %v668
        %670 = vmatmul.bf16.gmra.mxu0 %v481
        %v671 = vpop.f32.mrf.mxu0
        %v672 = vadd.f32 0.0, %v671
        %v673 = vpop.f32.mrf.mxu0
        %v674 = vadd.f32 0.0, %v673
        %675 = vdwg.mxu0
        %676 = vmatpush.bf16.msra.mxu0 %v610
        %677 = vmatpush.bf16.msra.mxu0 %v609
        %678 = vmatpush.bf16.msra.mxu0 %v608
        %679 = vmatpush.bf16.msra.mxu0 %v607
        %680 = vmatpush.bf16.msra.mxu0 %v606
        %681 = vmatpush.bf16.msra.mxu0 %v605
        %682 = vmatpush.bf16.msra.mxu0 %v604
        %683 = vmatpush.bf16.msra.mxu0 %v603
        %684 = vmatmul.bf16.gmra.mxu0 %v468
        %v685 = vpop.f32.mrf.mxu0
        %v686 = vadd.f32 %v637, %v685
        %v687 = vpop.f32.mrf.mxu0
        %v688 = vadd.f32 %v639, %v687
        %689 = vmatmul.bf16.gmra.mxu0 %v470
        %v690 = vpop.f32.mrf.mxu0
        %v691 = vadd.f32 %v642, %v690
        %v692 = vpop.f32.mrf.mxu0
        %v693 = vadd.f32 %v644, %v692
        %694 = vmatmul.bf16.gmra.mxu0 %v472
        %v695 = vpop.f32.mrf.mxu0
        %v696 = vadd.f32 %v647, %v695
        %v697 = vpop.f32.mrf.mxu0
        %v698 = vadd.f32 %v649, %v697
        %699 = vmatmul.bf16.gmra.mxu0 %v474
        %v700 = vpop.f32.mrf.mxu0
        %v701 = vadd.f32 %v652, %v700
        %v702 = vpop.f32.mrf.mxu0
        %v703 = vadd.f32 %v654, %v702
        %704 = vmatmul.bf16.gmra.mxu0 %v476
        %v705 = vpop.f32.mrf.mxu0
        %v706 = vadd.f32 %v657, %v705
        %v707 = vpop.f32.mrf.mxu0
        %v708 = vadd.f32 %v659, %v707
        %709 = vmatmul.bf16.gmra.mxu0 %v478
        %v710 = vpop.f32.mrf.mxu0
        %v711 = vadd.f32 %v662, %v710
        %v712 = vpop.f32.mrf.mxu0
        %v713 = vadd.f32 %v664, %v712
        %714 = vmatmul.bf16.gmra.mxu0 %v480
        %v715 = vpop.f32.mrf.mxu0
        %v716 = vadd.f32 %v667, %v715
        %v717 = vpop.f32.mrf.mxu0
        %v718 = vadd.f32 %v669, %v717
        %719 = vmatmul.bf16.gmra.mxu0 %v482
        %v720 = vpop.f32.mrf.mxu0
        %v721 = vadd.f32 %v672, %v720
        %v722 = vpop.f32.mrf.mxu0
        %v723 = vadd.f32 %v674, %v722
        %724 = vdwg.mxu0
        %v725 = vadd.f32 %v483, %v686
        %v726 = vadd.f32 %v484, %v688
        %v727 = vadd.f32 %v485, %v691
        %v728 = vadd.f32 %v486, %v693
        %v729 = vadd.f32 %v487, %v696
        %v730 = vadd.f32 %v488, %v698
        %v731 = vadd.f32 %v489, %v701
        %v732 = vadd.f32 %v490, %v703
        %v733 = vadd.f32 %v491, %v706
        %v734 = vadd.f32 %v492, %v708
        %v735 = vadd.f32 %v493, %v711
        %v736 = vadd.f32 %v494, %v713
        %v737 = vadd.f32 %v495, %v716
        %v738 = vadd.f32 %v496, %v718
        %v739 = vadd.f32 %v497, %v721
        %v740 = vadd.f32 %v498, %v723
        %741 = vst [vmem:[#allocation2] sm:$0xff] %v725
        %742 = vst [vmem:[#allocation2 + $0x8] sm:$0xff] %v726
        %743 = vst [vmem:[#allocation2 + $0x10] sm:$0xff] %v727
        %744 = vst [vmem:[#allocation2 + $0x18] sm:$0xff] %v728
        %745 = vst [vmem:[#allocation2 + $0x20] sm:$0xff] %v729
        %746 = vst [vmem:[#allocation2 + $0x28] sm:$0xff] %v730
        %747 = vst [vmem:[#allocation2 + $0x30] sm:$0xff] %v731
        %748 = vst [vmem:[#allocation2 + $0x38] sm:$0xff] %v732
        %749 = vst [vmem:[#allocation2 + $0x40] sm:$0xff] %v733
        %750 = vst [vmem:[#allocation2 + $0x48] sm:$0xff] %v734
        %751 = vst [vmem:[#allocation2 + $0x50] sm:$0xff] %v735
        %752 = vst [vmem:[#allocation2 + $0x58] sm:$0xff] %v736
        %753 = vst [vmem:[#allocation2 + $0x60] sm:$0xff] %v737
        %754 = vst [vmem:[#allocation2 + $0x68] sm:$0xff] %v738
        %755 = vst [vmem:[#allocation2 + $0x70] sm:$0xff] %v739
        %756 = vst [vmem:[#allocation2 + $0x78] sm:$0xff] %v740
        // Predicated region
        $region65: #{tpu_custom_call.1} parent=43 // pred_check
          %p757 = pneg %p375
        $region66: #{tpu_custom_call.1} parent=43 // pred_check_branch
          %759 = sbr.rel (%p757) target = $region68
        $region67: #{tpu_custom_call.1} parent=43 // pred_region
          %s760 = sld [smem:[#allocation3]]
          %s761 = sadd.f32 %s760, 1.0
          %v762 = vld [vmem:[%s330] sm:$0xf]
          %v763 = vld [vmem:[%s330 + $0x4] sm:$0xf]
          %v764 = vld [vmem:[%s330 + $0x8] sm:$0xf]
          %v765 = vld [vmem:[%s330 + $0xc] sm:$0xf]
          %v766 = vld [vmem:[%s330 + $0x10] sm:$0xf]
          %v767 = vld [vmem:[%s330 + $0x14] sm:$0xf]
          %v768 = vld [vmem:[%s330 + $0x18] sm:$0xf]
          %v769 = vld [vmem:[%s330 + $0x1c] sm:$0xf]
          %v770 = vld [vmem:[%s330 + $0x20] sm:$0xf]
          %v771 = vld [vmem:[%s330 + $0x24] sm:$0xf]
          %v772 = vld [vmem:[%s330 + $0x28] sm:$0xf]
          %v773 = vld [vmem:[%s330 + $0x2c] sm:$0xf]
          %v774 = vld [vmem:[%s330 + $0x30] sm:$0xf]
          %v775 = vld [vmem:[%s330 + $0x34] sm:$0xf]
          %v776 = vld [vmem:[%s330 + $0x38] sm:$0xf]
          %v777 = vld [vmem:[%s330 + $0x3c] sm:$0xf]
          %v778 = vunpack.c.l.bf16 %v762
          %v779 = vunpack.c.l.bf16 %v763
          %v780 = vunpack.c.l.bf16 %v764
          %v781 = vunpack.c.l.bf16 %v765
          %v782 = vunpack.c.l.bf16 %v766
          %v783 = vunpack.c.l.bf16 %v767
          %v784 = vunpack.c.l.bf16 %v768
          %v785 = vunpack.c.l.bf16 %v769
          %v786 = vunpack.c.l.bf16 %v770
          %v787 = vunpack.c.l.bf16 %v771
          %v788 = vunpack.c.l.bf16 %v772
          %v789 = vunpack.c.l.bf16 %v773
          %v790 = vunpack.c.l.bf16 %v774
          %v791 = vunpack.c.l.bf16 %v775
          %v792 = vunpack.c.l.bf16 %v776
          %v793 = vunpack.c.l.bf16 %v777
          %v794 = vstv %s761
          %v795 = vmul.f32 %v794, %v778
          %v796 = vmul.f32 %v794, %v779
          %v797 = vmul.f32 %v794, %v780
          %v798 = vmul.f32 %v794, %v781
          %v799 = vmul.f32 %v794, %v782
          %v800 = vmul.f32 %v794, %v783
          %v801 = vmul.f32 %v794, %v784
          %v802 = vmul.f32 %v794, %v785
          %v803 = vmul.f32 %v794, %v786
          %v804 = vmul.f32 %v794, %v787
          %v805 = vmul.f32 %v794, %v788
          %v806 = vmul.f32 %v794, %v789
          %v807 = vmul.f32 %v794, %v790
          %v808 = vmul.f32 %v794, %v791
          %v809 = vmul.f32 %v794, %v792
          %v810 = vmul.f32 %v794, %v793
          %v811 = vld [vmem:[#allocation2] sm:$0xff]
          %v812 = vld [vmem:[#allocation2 + $0x8] sm:$0xff]
          %v813 = vld [vmem:[#allocation2 + $0x10] sm:$0xff]
          %v814 = vld [vmem:[#allocation2 + $0x18] sm:$0xff]
          %v815 = vld [vmem:[#allocation2 + $0x20] sm:$0xff]
          %v816 = vld [vmem:[#allocation2 + $0x28] sm:$0xff]
          %v817 = vld [vmem:[#allocation2 + $0x30] sm:$0xff]
          %v818 = vld [vmem:[#allocation2 + $0x38] sm:$0xff]
          %v819 = vld [vmem:[#allocation2 + $0x40] sm:$0xff]
          %v820 = vld [vmem:[#allocation2 + $0x48] sm:$0xff]
          %v821 = vld [vmem:[#allocation2 + $0x50] sm:$0xff]
          %v822 = vld [vmem:[#allocation2 + $0x58] sm:$0xff]
          %v823 = vld [vmem:[#allocation2 + $0x60] sm:$0xff]
          %v824 = vld [vmem:[#allocation2 + $0x68] sm:$0xff]
          %v825 = vld [vmem:[#allocation2 + $0x70] sm:$0xff]
          %v826 = vld [vmem:[#allocation2 + $0x78] sm:$0xff]
          %v827 = vadd.f32 %v795, %v811
          %v828 = vadd.f32 %v796, %v812
          %v829 = vadd.f32 %v797, %v813
          %v830 = vadd.f32 %v798, %v814
          %v831 = vadd.f32 %v799, %v815
          %v832 = vadd.f32 %v800, %v816
          %v833 = vadd.f32 %v801, %v817
          %v834 = vadd.f32 %v802, %v818
          %v835 = vadd.f32 %v803, %v819
          %v836 = vadd.f32 %v804, %v820
          %v837 = vadd.f32 %v805, %v821
          %v838 = vadd.f32 %v806, %v822
          %v839 = vadd.f32 %v807, %v823
          %v840 = vadd.f32 %v808, %v824
          %v841 = vadd.f32 %v809, %v825
          %v842 = vadd.f32 %v810, %v826
          %v843 = vpack.c.bf16 %v828, %v827
          %v844 = vpack.c.bf16 %v830, %v829
          %v845 = vpack.c.bf16 %v832, %v831
          %v846 = vpack.c.bf16 %v834, %v833
          %v847 = vpack.c.bf16 %v836, %v835
          %v848 = vpack.c.bf16 %v838, %v837
          %v849 = vpack.c.bf16 %v840, %v839
          %v850 = vpack.c.bf16 %v842, %v841
          %v851 = vld [vmem:[#allocation10] sm:$0xf]
          %v852 = vld [vmem:[#allocation10 + $0x4] sm:$0xf]
          %v853 = vld [vmem:[#allocation10 + $0x8] sm:$0xf]
          %v854 = vld [vmem:[#allocation10 + $0xc] sm:$0xf]
          %v855 = vld [vmem:[#allocation10 + $0x10] sm:$0xf]
          %v856 = vld [vmem:[#allocation10 + $0x14] sm:$0xf]
          %v857 = vld [vmem:[#allocation10 + $0x18] sm:$0xf]
          %v858 = vld [vmem:[#allocation10 + $0x1c] sm:$0xf]
          %v859 = vld [vmem:[#allocation10 + $0x20] sm:$0xf]
          %v860 = vld [vmem:[#allocation10 + $0x24] sm:$0xf]
          %v861 = vld [vmem:[#allocation10 + $0x28] sm:$0xf]
          %v862 = vld [vmem:[#allocation10 + $0x2c] sm:$0xf]
          %v863 = vld [vmem:[#allocation10 + $0x30] sm:$0xf]
          %v864 = vld [vmem:[#allocation10 + $0x34] sm:$0xf]
          %v865 = vld [vmem:[#allocation10 + $0x38] sm:$0xf]
          %v866 = vld [vmem:[#allocation10 + $0x3c] sm:$0xf]
          %v867 = vld [vmem:[%s5] sm:$0x1]
          %v869 = vperm.slane %v867, 0
          %v887 = vunpack.c.l.b16 %v851
          %v888 = vunpack.c.l.b16 %v852
          %v889 = vunpack.c.l.b16 %v853
          %v890 = vunpack.c.l.b16 %v854
          %v891 = vunpack.c.l.b16 %v855
          %v892 = vunpack.c.l.b16 %v856
          %v893 = vunpack.c.l.b16 %v857
          %v894 = vunpack.c.l.b16 %v858
          %v895 = vunpack.c.l.b16 %v859
          %v896 = vunpack.c.l.b16 %v860
          %v897 = vunpack.c.l.b16 %v861
          %v898 = vunpack.c.l.b16 %v862
          %v899 = vunpack.c.l.b16 %v863
          %v900 = vunpack.c.l.b16 %v864
          %v901 = vunpack.c.l.b16 %v865
          %v902 = vunpack.c.l.b16 %v866
          %v903 = vpack.c.b16 %v888, %v887
          %v904 = vpack.c.b16 %v890, %v889
          %v905 = vpack.c.b16 %v892, %v891
          %v906 = vpack.c.b16 %v894, %v893
          %v907 = vpack.c.b16 %v896, %v895
          %v908 = vpack.c.b16 %v898, %v897
          %v909 = vpack.c.b16 %v900, %v899
          %v910 = vpack.c.b16 %v902, %v901
          %919 = vmatpush.bf16.msra.mxu0 %v910
          %920 = vmatpush.bf16.msra.mxu0 %v909
          %921 = vmatpush.bf16.msra.mxu0 %v908
          %922 = vmatpush.bf16.msra.mxu0 %v907
          %923 = vmatpush.bf16.msra.mxu0 %v906
          %924 = vmatpush.bf16.msra.mxu0 %v905
          %925 = vmatpush.bf16.msra.mxu0 %v904
          %926 = vmatpush.bf16.msra.mxu0 %v903
          %927 = vmatmul.bf16.gmra.mxu0 %v843
          %v928 = vpop.f32.mrf.mxu0
          %v929 = vadd.f32 %v869, %v928
          %v930 = vpop.f32.mrf.mxu0
          %v931 = vadd.f32 %v869, %v930
          %932 = vmatmul.bf16.gmra.mxu0 %v844
          %v933 = vpop.f32.mrf.mxu0
          %v934 = vadd.f32 %v869, %v933
          %v935 = vpop.f32.mrf.mxu0
          %v936 = vadd.f32 %v869, %v935
          %937 = vmatmul.bf16.gmra.mxu0 %v845
          %v938 = vpop.f32.mrf.mxu0
          %v939 = vadd.f32 %v869, %v938
          %v940 = vpop.f32.mrf.mxu0
          %v941 = vadd.f32 %v869, %v940
          %942 = vmatmul.bf16.gmra.mxu0 %v846
          %v943 = vpop.f32.mrf.mxu0
          %v944 = vadd.f32 %v869, %v943
          %v945 = vpop.f32.mrf.mxu0
          %v946 = vadd.f32 %v869, %v945
          %947 = vmatmul.bf16.gmra.mxu0 %v847
          %v948 = vpop.f32.mrf.mxu0
          %v949 = vadd.f32 %v869, %v948
          %v950 = vpop.f32.mrf.mxu0
          %v951 = vadd.f32 %v869, %v950
          %952 = vmatmul.bf16.gmra.mxu0 %v848
          %v953 = vpop.f32.mrf.mxu0
          %v954 = vadd.f32 %v869, %v953
          %v955 = vpop.f32.mrf.mxu0
          %v956 = vadd.f32 %v869, %v955
          %957 = vmatmul.bf16.gmra.mxu0 %v849
          %v958 = vpop.f32.mrf.mxu0
          %v959 = vadd.f32 %v869, %v958
          %v960 = vpop.f32.mrf.mxu0
          %v961 = vadd.f32 %v869, %v960
          %962 = vmatmul.bf16.gmra.mxu0 %v850
          %v963 = vpop.f32.mrf.mxu0
          %v964 = vadd.f32 %v869, %v963
          %v965 = vpop.f32.mrf.mxu0
          %v966 = vadd.f32 %v869, %v965
          %967 = vdwg.mxu0
          %968 = vst [vmem:[%s369] sm:$0xff] %v929
          %969 = vst [vmem:[%s369 + $0x8] sm:$0xff] %v931
          %970 = vst [vmem:[%s369 + $0x10] sm:$0xff] %v934
          %971 = vst [vmem:[%s369 + $0x18] sm:$0xff] %v936
          %972 = vst [vmem:[%s369 + $0x20] sm:$0xff] %v939
          %973 = vst [vmem:[%s369 + $0x28] sm:$0xff] %v941
          %974 = vst [vmem:[%s369 + $0x30] sm:$0xff] %v944
          %975 = vst [vmem:[%s369 + $0x38] sm:$0xff] %v946
          %976 = vst [vmem:[%s369 + $0x40] sm:$0xff] %v949
          %977 = vst [vmem:[%s369 + $0x48] sm:$0xff] %v951
          %978 = vst [vmem:[%s369 + $0x50] sm:$0xff] %v954
          %979 = vst [vmem:[%s369 + $0x58] sm:$0xff] %v956
          %980 = vst [vmem:[%s369 + $0x60] sm:$0xff] %v959
          %981 = vst [vmem:[%s369 + $0x68] sm:$0xff] %v961
          %982 = vst [vmem:[%s369 + $0x70] sm:$0xff] %v964
          %983 = vst [vmem:[%s369 + $0x78] sm:$0xff] %v966
        $region68: #{tpu_custom_call.1} parent=43 // pred_fallthru
          _
        %s984 = sand.u32 %s188, 1
        %s985 = scalar_lea.sflag [#allocation6], %s984
        %s986 = sand.u32 %s188, 1
        %s987 = smul.addr %s986, 128
        %s988 = scalar_lea.vmem [#allocation11], %s987
        // Predicated region
        $region69: #{tpu_custom_call.1} parent=43 // pred_check
          %p989 = pneg %p198
        $region70: #{tpu_custom_call.1} parent=43 // pred_check_branch
          %991 = sbr.rel (%p989) target = $region72
        $region71: #{tpu_custom_call.1} parent=43 // pred_region
          %s992 = smul.u32 16, %s29
          %994 = vsyncadd %s985, 0
          %s995 = smul.addr %s992, 8
          %s996 = scalar_lea.hbm %s6, %s995
          %s997 = sshll.u32 %s988, 4
          %s998 = int_to_ptr.vmem [resolvable:$true] %s997
          %s999 = sshll.u32 %s996, 4
          %s1000 = int_to_ptr.hbm [resolvable:$true] %s999
          %1005 = dma.vmem_to_hbm [thread:$0]  %s998, 2048, %s1000, %s985, 128, 128, 8
        $region72: #{tpu_custom_call.1} parent=43 // pred_fallthru
          _
      $region44: #{tpu_custom_call.1} parent=5 // pred_fallthru
        _
      %p1006 = scmp.le.s32.totalorder 2, %s20
      // Predicated region
      $region73: #{tpu_custom_call.1} parent=5 // pred_check
        %p1007 = pneg %p1006
      $region74: #{tpu_custom_call.1} parent=5 // pred_check_branch
        %1009 = sbr.rel (%p1007) target = $region76
      $region75: #{tpu_custom_call.1} parent=5 // pred_region
        %s1010 = ssub.s32 %s20, 2
        // Predicated region
        $region77: #{tpu_custom_call.1} parent=75 // pred_check
          %p1011 = pneg %p204
        $region78: #{tpu_custom_call.1} parent=75 // pred_check_branch
          %1013 = sbr.rel (%p1011) target = $region80
        $region79: #{tpu_custom_call.1} parent=75 // pred_region
          %s1014 = sand.u32 %s189, 1
          %s1015 = scalar_lea.sflag [#allocation6], %s1014
          %s1016 = sand.u32 %s189, 1
          %s1017 = smul.addr %s1016, 128
          %s1018 = scalar_lea.vmem [#allocation11], %s1017
          %1020 = dma.done %s1015, 2048
        $region80: #{tpu_custom_call.1} parent=75 // pred_fallthru
          _
      $region76: #{tpu_custom_call.1} parent=5 // pred_fallthru
        _
    $region6: #{tpu_custom_call.1} parent=1 // loop_footer
      %s24 = sadd.s32 1, %s20
    $region7: #{tpu_custom_call.1} parent=1 // loop_footer_branch
      %19 = sbr.rel target = $region3
    $region8: #{tpu_custom_call.1} parent=1 // loop_exit
      _
    %1021 = vsyncpa [#allocation5], 1
    %s1022 = scalar_lea.sflag [#allocation5], 1
    %1023 = vsyncpa %s1022, 1
    %1024 = vsyncpa [#allocation8], 1
    %1025 = vsyncpa [#allocation6], 1
    %s1026 = scalar_lea.sflag [#allocation6], 1
    %1027 = vsyncpa %s1026, 1

</llo_original>
